<compile_context>
chip_gen: v7x
topology: tpu7x:2x2x1
jax: 0.10.0
libtpu: 0.0.40
codegen_flags: <defaults>
</compile_context>

<pallas_src>
import functools
import math

import jax
import jax.numpy as jnp
from jax.experimental import pallas as pl
from jax.experimental.pallas import tpu as pltpu


def _cdiv(a, b):
    return -(-a // b)


# ----------------------------------------------------------------------------
# Kernels
# ----------------------------------------------------------------------------
def _drop_path_kernel(u_ref, x_ref, o_ref, *, keep_prob, scale_by_keep, native_mul):
    """Bernoulli-threshold the per-sample uniform, scale, broadcast-multiply."""
    u = u_ref[...]                                                # (tile_n, 1) fp32
    scale = (1.0 / keep_prob) if (scale_by_keep and keep_prob > 0.0) else 1.0
    mask = jnp.where(u < keep_prob, jnp.float32(scale), jnp.float32(0.0))
    if native_mul:
        o_ref[...] = x_ref[...] * mask.astype(x_ref.dtype)
    else:
        o_ref[...] = (x_ref[...].astype(jnp.float32) * mask).astype(o_ref.dtype)


def _drop_path_add_kernel(u_ref, x_ref, s_ref, o_ref, *, keep_prob, scale_by_keep,
                          native_mul):
    """Fused residual: out = skip + mask * x."""
    u = u_ref[...]
    scale = (1.0 / keep_prob) if (scale_by_keep and keep_prob > 0.0) else 1.0
    mask = jnp.where(u < keep_prob, jnp.float32(scale), jnp.float32(0.0))
    if native_mul:
        o_ref[...] = s_ref[...] + x_ref[...] * mask.astype(x_ref.dtype)
    else:
        o_ref[...] = (s_ref[...].astype(jnp.float32)
                      + x_ref[...].astype(jnp.float32) * mask).astype(o_ref.dtype)


# ----------------------------------------------------------------------------
# Per-generation tuning + tiling
# ----------------------------------------------------------------------------
def _tpu_tuning(n_streams):
    """Return (target_block_bytes, vmem_limit_bytes, two_tensorcores, native_bf16)."""
    kind = ""
    try:
        kind = jax.devices()[0].device_kind.lower()
    except Exception:
        pass
    if "v7" in kind:                       # 64 MiB VMEM, 2 TCs, ~3.2 TB/s HBM
        budget, vmem_limit, two_tc, bf16 = 32 << 20, 48 << 20, True, True
    elif "v6" in kind:                     # 128 MiB VMEM (32 MiB default scoped)
        budget, vmem_limit, two_tc, bf16 = 16 << 20, None, False, True
    elif "v5" in kind:                     # 16 MiB default scoped VMEM
        budget, vmem_limit, two_tc, bf16 = 8 << 20, None, False, False
    else:                                  # unknown: conservative, works everywhere
        budget, vmem_limit, two_tc, bf16 = 8 << 20, None, False, False
    target = max(1 << 20, budget // (2 * n_streams))   # double-buffered streams
    return target, vmem_limit, two_tc, bf16


def _refold_factor(N, F, pack):
    """If the batch dim underfills the sublane pack, fold feature groups into rows."""
    if N >= pack or F < 256:
        return 1
    need = _cdiv(pack, N)
    for g in range(need, min(F, 1024) + 1):
        if F % g == 0 and (F // g) % 128 == 0:
            return g
    return 1


def _pick_tiles(rows, cols, itemsize, target_block_bytes, split_for_two_cores):
    """Feature tile first (lane-dense), then grow row tile to ~target bytes."""
    pack = max(1, 32 // itemsize)          # 8 fp32 / 16 bf16 / 32 int8 sublane pack
    tile_n_min = min(rows, pack)

    # 1) Feature tile: as wide as possible (ideally full cols; else 128-multiple).
    if cols <= 128 or cols * tile_n_min * itemsize <= target_block_bytes:
        tile_f = cols
    else:
        tile_f = min(cols, max(1, target_block_bytes // (tile_n_min * itemsize)))
        tile_f = max(128, (tile_f // 128) * 128)
        if tile_f >= cols:
            tile_f = cols

    # 2) Row tile: grow until the block reaches ~target_block_bytes.
    if rows <= pack:
        tile_n = rows
    else:
        want_n = max(pack, target_block_bytes // (tile_f * itemsize))
        tile_n = rows if want_n >= rows else max(pack, (want_n // pack) * pack)

    # 3) v7x megacore: ensure >= 2 blocks so both TensorCores get work.
    if split_for_two_cores and _cdiv(rows, tile_n) * _cdiv(cols, tile_f) == 1:
        half_n = _cdiv(tile_n, 2 * pack) * pack
        half_f = ((tile_f // 2) // 128) * 128
        if tile_n > pack and pack <= half_n < rows:
            tile_n = half_n
        elif tile_f > 128 and 128 <= half_f < cols:
            tile_f = half_f

    # Lowering constraints: last two block dims divisible by (pack, 128) or full.
    assert tile_f == cols or tile_f % 128 == 0
    assert tile_n == rows or tile_n % pack == 0
    return tile_n, tile_f


# ----------------------------------------------------------------------------
# Wrapper
# ----------------------------------------------------------------------------
def drop_path_pallas(x, key, drop_prob: float = 0.0, training: bool = False,
                     scale_by_keep: bool = True, residual=None):
    """timm-style drop_path. If `residual` is given, fuses out = residual + drop_path(x)."""
    if residual is not None:
        assert residual.shape == x.shape and residual.dtype == x.dtype
    if drop_prob == 0.0 or not training:
        return x if residual is None else x + residual

    N = x.shape[0]
    F = math.prod(x.shape[1:])
    keep_prob = 1.0 - drop_prob
    itemsize = jnp.dtype(x.dtype).itemsize
    pack = max(1, 32 // itemsize)

    n_streams = 2 if residual is None else 3
    target, vmem_limit, two_tc, native_bf16 = _tpu_tuning(n_streams)
    native_mul = bool(native_bf16 and itemsize < 4)

    # Re-fold so the row dim fills the 8-sublane vreg tile when batch is tiny.
    G = _refold_factor(N, F, pack)
    rows, cols = N * G, F // G
    x2 = x.reshape(rows, cols)
    s2 = residual.reshape(rows, cols) if residual is not None else None

    # Per-sample uniforms (tiny: N scalars), repeated per folded row group.
    u = jax.random.uniform(key, (N, 1), dtype=jnp.float32)
    if G > 1:
        u = jnp.repeat(u, G, axis=0)

    tile_n, tile_f = _pick_tiles(rows, cols, itemsize, target, two_tc)
    grid = (_cdiv(rows, tile_n), _cdiv(cols, tile_f))

    data_blk = pl.BlockSpec((tile_n, tile_f), lambda i, j: (i, j))
    u_blk = pl.BlockSpec((tile_n, 1), lambda i, j: (i, 0))

    cp_kwargs = dict(dimension_semantics=("parallel", "parallel"))
    if vmem_limit is not None:
        cp_kwargs["vmem_limit_bytes"] = vmem_limit

    if residual is None:
        kernel = functools.partial(_drop_path_kernel, keep_prob=keep_prob,
                                   scale_by_keep=scale_by_keep, native_mul=native_mul)
        in_specs = [u_blk, data_blk]
        operands = (u, x2)
    else:
        kernel = functools.partial(_drop_path_add_kernel, keep_prob=keep_prob,
                                   scale_by_keep=scale_by_keep, native_mul=native_mul)
        in_specs = [u_blk, data_blk, data_blk]
        operands = (u, x2, s2)

    # TODO(synk): for very large drop_prob, scalar-prefetch the keep decisions and
    # skip the x DMA for fully-dropped row blocks (bounded ~drop_prob x read traffic).
    out = pl.pallas_call(
        kernel,
        out_shape=jax.ShapeDtypeStruct((rows, cols), x.dtype),
        grid=grid,
        in_specs=in_specs,
        out_specs=pl.BlockSpec((tile_n, tile_f), lambda i, j: (i, j)),
        compiler_params=pltpu.CompilerParams(**cp_kwargs),
    )(*operands)

    return out.reshape(x.shape)


class DropPathPallas:
    """Mirror of the PyTorch DropPath module (no parameters)."""

    def __init__(self, drop_prob: float = 0.0, scale_by_keep: bool = True):
        self.drop_prob = drop_prob
        self.scale_by_keep = scale_by_keep
        self.training = True

    def __call__(self, x, key, residual=None):
        return drop_path_pallas(x, key, self.drop_prob, self.training,
                                self.scale_by_keep, residual=residual)


if __name__ == "__main__":
    key = jax.random.PRNGKey(0)
    kx, kmask, kskip = jax.random.split(key, 3)

    # Small NCHW input consistent with conv-style usage: (batch=2, C=4, H=16, W=16)
    x = jax.random.normal(kx, (2, 4, 16, 16), dtype=jnp.float32)

    drop_prob = 0.25
    keep_prob = 1.0 - drop_prob
    module = DropPathPallas(drop_prob=drop_prob, scale_by_keep=True)
    module.training = True

    y = jax.block_until_ready(module(x, kmask))

    # Pure-JAX reference with the same per-sample uniforms.
    u_ref = jax.random.uniform(kmask, (x.shape[0], 1), dtype=jnp.float32)
    mask_ref = jnp.where(u_ref < keep_prob, 1.0 / keep_prob, 0.0).reshape(
        x.shape[0], 1, 1, 1)
    y_ref = x * mask_ref
    assert y.shape == x.shape and y.dtype == x.dtype
    assert jnp.allclose(y, y_ref, atol=1e-6, rtol=1e-6)

    # Eval mode / drop_prob=0 -> identity (matches PyTorch early-return).
    module.training = False
    assert jnp.array_equal(jax.block_until_ready(module(x, kmask)), x)
    module.training = True

    # Fused residual-add variant: out = skip + drop_path(x).
    skip = jax.random.normal(kskip, x.shape, dtype=x.dtype)
    y_fused = jax.block_until_ready(module(x, kmask, residual=skip))
    assert jnp.allclose(y_fused, skip + y_ref, atol=1e-6, rtol=1e-6)

    # Larger, batch-tiled case exercising the 2-D grid path.
    kx2, kmask2 = jax.random.split(jax.random.PRNGKey(1))
    x_big = jax.random.normal(kx2, (16, 8, 32, 32), dtype=jnp.float32)
    y_big = jax.block_until_ready(
        drop_path_pallas(x_big, kmask2, drop_prob=0.5, training=True))
    u_big = jax.random.uniform(kmask2, (x_big.shape[0], 1), dtype=jnp.float32)
    mask_big = jnp.where(u_big < 0.5, 2.0, 0.0).reshape(x_big.shape[0], 1, 1, 1)
    assert jnp.allclose(y_big, x_big * mask_big, atol=1e-6, rtol=1e-6)

    # bf16 path (native-dtype multiply on v6e/v7x, fp32 path elsewhere).
    x_bf = x_big.astype(jnp.bfloat16)
    y_bf = jax.block_until_ready(
        drop_path_pallas(x_bf, kmask2, drop_prob=0.5, training=True))
    assert y_bf.dtype == jnp.bfloat16
    assert jnp.allclose(y_bf.astype(jnp.float32),
                        x_bf.astype(jnp.float32) * mask_big, atol=2e-2, rtol=2e-2)

    print("KERNEL_OK")
</pallas_src>

<mosaic_0001>
module attributes {stable_mosaic.version = 11 : i64} {
  func.func @_drop_path_kernel(%arg0: i32, %arg1: i32, %arg2: memref<8x1xf32, #tpu.memory_space<vmem>>, %arg3: memref<8x256xf32, #tpu.memory_space<vmem>>, %arg4: memref<8x256xf32, #tpu.memory_space<vmem>>) attributes {dimension_semantics = [#tpu.dimension_semantics<parallel>, #tpu.dimension_semantics<parallel>], iteration_bounds = array<i64: 1, 1>, scalar_prefetch = 0 : i64, scratch_operands = 0 : i64, tpu.core_type = #tpu.core_type<tc>, window_params = [{transform_indices = @transform_0, window_bounds = array<i64: 8, 1>}, {transform_indices = @transform_1, window_bounds = array<i64: 8, 256>}, {transform_indices = @transform_2, window_bounds = array<i64: 8, 256>}]} {
    %c0 = arith.constant 0 : index
    %c0_0 = arith.constant 0 : index
    %0 = vector.load %arg2[%c0, %c0_0] : memref<8x1xf32, #tpu.memory_space<vmem>>, vector<8x1xf32>
    %cst = arith.constant 7.500000e-01 : f32
    %1 = vector.broadcast %cst : f32 to vector<8x1xf32>
    %2 = arith.cmpf olt, %0, %1 : vector<8x1xf32>
    %cst_1 = arith.constant 1.33333337 : f32
    %cst_2 = arith.constant 0.000000e+00 : f32
    %3 = vector.broadcast %cst_1 : f32 to vector<8x1xf32>
    %4 = vector.broadcast %cst_2 : f32 to vector<8x1xf32>
    %5 = arith.select %2, %3, %4 : vector<8x1xi1>, vector<8x1xf32>
    %c0_3 = arith.constant 0 : index
    %c0_4 = arith.constant 0 : index
    %6 = vector.load %arg3[%c0_3, %c0_4] : memref<8x256xf32, #tpu.memory_space<vmem>>, vector<8x256xf32>
    %7 = vector.broadcast %5 : vector<8x1xf32> to vector<8x256xf32>
    %8 = arith.mulf %6, %7 : vector<8x256xf32>
    %c0_5 = arith.constant 0 : index
    %c0_6 = arith.constant 0 : index
    %9 = vector.load %arg4[%c0_5, %c0_6] : memref<8x256xf32, #tpu.memory_space<vmem>>, vector<8x256xf32>
    tpu.vector_store %arg4[%c0_5, %c0_6], %8 {strides = array<i32>} : memref<8x256xf32, #tpu.memory_space<vmem>>, vector<8x256xf32>,
    return
  }
  func.func @transform_0(%arg0: i32, %arg1: i32) -> (i32, i32) {
    %c0_i32 = arith.constant 0 : i32
    %c0_i32_0 = arith.constant 0 : i32
    return %arg0, %c0_i32 : i32, i32
  }
  func.func @transform_1(%arg0: i32, %arg1: i32) -> (i32, i32) {
    %c0_i32 = arith.constant 0 : i32
    return %arg0, %arg1 : i32, i32
  }
  func.func @transform_2(%arg0: i32, %arg1: i32) -> (i32, i32) {
    %c0_i32 = arith.constant 0 : i32
    return %arg0, %arg1 : i32, i32
  }
}

</mosaic_0001>

<llo_original>
// kernel: tpu_custom_call.1
$region0: #{tpu_custom_call.1}
  #allocation0 [shape = 'u32[]', space=smem, size = 0x4, offset = 0x4, fixed_abs, tag = 'smem constant byte address 0x4 - core index']
  #allocation1 [shape = 'u32[144,128]{1,0:T(1,128)}', space=vmem, size = 0x12000, scoped, tag = 'internal scratch']
  %s0 = inlined_call_operand.vmem [shape: f32[8,1], index: 0, kind: input, shape index: {}]
  %s1 = inlined_call_operand.hbm [shape: f32[8,256], index: 1, kind: input, shape index: {}]
  %s2 = inlined_call_operand.hbm [shape: f32[8,256], index: 2, kind: output, shape index: {}]
  %s3 = sld [smem:[#allocation0]]
  $region22: #{tpu_custom_call.1} parent=0
    _
  %s5 = ssub.s32 1, %s3
  %s6 = scalar_select 0, %s5, %s3
  $region1: #{tpu_custom_call.1} parent=0
    #allocation2 [shape = 'u8[8192]{0}', space=vmem, size = 0x2000, scoped, tag = 'input window, operand 1, single buffered']
    #allocation3 [shape = 's32[1]{0}', space=sflag, size = 0x4, scoped, tag = 'scoped memory for tpu_custom_call.1']
    #allocation4 [shape = 's32[1]{0}', space=sflag, size = 0x4, scoped, tag = 'scoped memory for tpu_custom_call.1']
    #allocation5 [shape = 'u8[8192]{0}', space=vmem, size = 0x2000, scoped, tag = 'output window, operand 0, single buffered']
    %7 = vsyncpa [#allocation3], 0
    %8 = vsyncpa [#allocation4], 0
    // Predicated region
    $region2: #{tpu_custom_call.1} parent=1 // pred_check
      _
    $region3: #{tpu_custom_call.1} parent=1 // pred_check_branch
      %10 = sbr.rel (0) target = $region5
    $region4: #{tpu_custom_call.1} parent=1 // pred_region
      _
    $region5: #{tpu_custom_call.1} parent=1 // pred_fallthru
      _
    // Predicated region
    $region6: #{tpu_custom_call.1} parent=1 // pred_check
      _
    $region7: #{tpu_custom_call.1} parent=1 // pred_check_branch
      %12 = sbr.rel (0) target = $region9
    $region8: #{tpu_custom_call.1} parent=1 // pred_region
      %s14 = ssub.s32 256, 256
      %15 = vsyncadd [#allocation3], %s14
      %s17 = sshll.u32 [#allocation2], 4
      %s18 = int_to_ptr.vmem [resolvable:$true] %s17
      %20 = dma.hbm_to_vmem [thread:$0]  %s1, 256, %s18, [#allocation3]
    $region9: #{tpu_custom_call.1} parent=1 // pred_fallthru
      _
    // Predicated region
    $region10: #{tpu_custom_call.1} parent=1 // pred_check
      _
    $region11: #{tpu_custom_call.1} parent=1 // pred_check_branch
      %22 = sbr.rel (0) target = $region13
    $region12: #{tpu_custom_call.1} parent=1 // pred_region
      %23 = dma.done [#allocation3], 256
    $region13: #{tpu_custom_call.1} parent=1 // pred_fallthru
      _
    %v24 = vld [vmem:[%s0] sm:$0xff]
    %vm25 = vcmp.lt.f32.partialorder %v24, 0.75
    %v26 = vsel %vm25, 1.3333334, 0.0
    %v27 = vld [vmem:[#allocation2] sm:$0xff]
    %v28 = vld [vmem:[#allocation2 + $0x8] sm:$0xff]
    %30 = vset.pattern.permute.xlu0 0
    %31 = vperm.xlu0 %30, %v26
    %v32 = vpop.permute.xlu0 %31
    %v34 = vmul.f32 %v27, %v32
    %v35 = vmul.f32 %v28, %v32
    %36 = vst [vmem:[#allocation5] sm:$0xff] %v34
    %37 = vst [vmem:[#allocation5 + $0x8] sm:$0xff] %v35
    // Predicated region
    $region14: #{tpu_custom_call.1} parent=1 // pred_check
      _
    $region15: #{tpu_custom_call.1} parent=1 // pred_check_branch
      %39 = sbr.rel (0) target = $region17
    $region16: #{tpu_custom_call.1} parent=1 // pred_region
      %s41 = ssub.s32 256, 256
      %42 = vsyncadd [#allocation4], %s41
      %s44 = sshll.u32 [#allocation5], 4
      %s45 = int_to_ptr.vmem [resolvable:$true] %s44
      %47 = dma.vmem_to_hbm [thread:$0]  %s45, 256, %s2, [#allocation4]
    $region17: #{tpu_custom_call.1} parent=1 // pred_fallthru
      _
    // Predicated region
    $region18: #{tpu_custom_call.1} parent=1 // pred_check
      _
    $region19: #{tpu_custom_call.1} parent=1 // pred_check_branch
      %49 = sbr.rel (0) target = $region21
    $region20: #{tpu_custom_call.1} parent=1 // pred_region
      %50 = dma.done [#allocation4], 256
    $region21: #{tpu_custom_call.1} parent=1 // pred_fallthru
      _
    %51 = vsyncpa [#allocation3], 1
    %52 = vsyncpa [#allocation4], 1

</llo_original>
